<compile_context>
chip_gen: v6e
topology: v6e:2x2x1
jax: 0.10.0
libtpu: 0.0.40
codegen_flags: <defaults>
</compile_context>

<pallas_src>
import functools

import jax
import jax.numpy as jnp
from jax.experimental import pallas as pl
from jax.experimental.pallas import tpu as pltpu


# ---------------------------------------------------------------------------
# In-kernel math helpers
# ---------------------------------------------------------------------------

_SQRT_HALF = 0.7071067811865476


def _erf(x):
    # Abramowitz & Stegun 7.1.26 polynomial, |error| <= 1.5e-7.  Uses only
    # exp / mul / add / div / select, all of which lower cleanly in Mosaic.
    p = 0.3275911
    a1, a2, a3, a4, a5 = (0.254829592, -0.284496736, 1.421413741,
                          -1.453152027, 1.061405429)
    z = jnp.abs(x)
    t = 1.0 / (1.0 + p * z)
    poly = ((((a5 * t + a4) * t + a3) * t + a2) * t + a1) * t
    y = 1.0 - poly * jnp.exp(-z * z)
    return jnp.where(x >= 0, y, -y)


def _gelu_exact(x):
    # Exact (erf-based) GELU, matching torch.nn.GELU() default.
    return 0.5 * x * (1.0 + _erf(x * _SQRT_HALF))


# ---------------------------------------------------------------------------
# Kernel
# ---------------------------------------------------------------------------

def _cmlp_kernel(has_bias, xw_ref, pos_ref, w1t_ref, w2_ref, wr_ref, *refs):
    """One row-tile of the CompressionMLP.

    xw_ref : (TR, L)  raw unfolded windows (no positional embedding)
    pos_ref: (TR, L)  positional embedding, pre-tiled so row j uses d = j % hs
    w1t_ref: (L, 4L)  fc1 weight, transposed
    w2_ref : (1, 4L)  fc2 weight row
    wr_ref : (1, L)   residual_proj weight row
    [b1_ref: (1, 4L)  fc1 bias]                          (only if has_bias)
    [c_ref : (1, 1)   fc2.bias + residual_proj.bias]     (only if has_bias)
    o_ref  : (TR, 1)
    """
    if has_bias:
        b1_ref, c_ref, o_ref = refs
    else:
        (o_ref,) = refs

    xw = xw_ref[...].astype(jnp.float32)                       # (TR, L)
    xp = xw + pos_ref[...].astype(jnp.float32)                 # (TR, L)

    # fc1 on the MXU, f32 accumulation.
    h = jnp.dot(xp, w1t_ref[...].astype(jnp.float32),
                preferred_element_type=jnp.float32)            # (TR, 4L)
    if has_bias:
        h = h + b1_ref[...].astype(jnp.float32)
    h = _gelu_exact(h)
    # TODO(synk): nn.Dropout(p=0.05) is identity in eval mode; training-mode
    # RNG dropout is not implemented in-kernel.

    # fc2 (out_features=1) and residual projection as cross-lane reductions.
    main = jnp.sum(h * w2_ref[...].astype(jnp.float32), axis=-1, keepdims=True)
    res = jnp.sum(xw * wr_ref[...].astype(jnp.float32), axis=-1, keepdims=True)
    out = main + res
    if has_bias:
        out = out + c_ref[...].astype(jnp.float32)
    out = jnp.clip(out, -3.0, 3.0)
    o_ref[...] = out.astype(o_ref.dtype)


# ---------------------------------------------------------------------------
# Wrapper
# ---------------------------------------------------------------------------

def _choose_tile_rows(R, L, hs, *, vmem_budget_bytes=8 * 1024 * 1024,
                      max_rows=8192):
    """Largest row tile (multiple of hs) whose f32 working set fits the budget."""
    H = 4 * L
    # Rough live f32 bytes per row: double-buffered input block + pos tile +
    # pos-shifted copy + a few (TR, 4L) fc1/GELU temporaries.
    bytes_per_row = 4 * (2 * L + L + L + 3 * H)
    t = vmem_budget_bytes // max(bytes_per_row, 1)
    t = min(int(t), max_rows, R)
    t = max((t // hs) * hs, hs)
    return int(t)


def compression_mlp_forward(x, params, *, block_length, stride_length):
    """Pallas forward pass of CompressionMLP.

    x: (B, n_head, T, hs).  Returns (B, n_head, num_blocks, hs), or x
    unchanged when T < block_length (as in the reference module).
    """
    B, nh, T, hs = x.shape
    L = block_length
    if T < L:
        return x
    assert hs % 8 == 0, "head size must be a multiple of 8 (TPU sublane)"

    has_bias = params["b1"] is not None
    H = 4 * L

    # --- unfold into rows: (B, nh, num_blocks, hs, L) -> (R, L) --------------
    nb = (T - L) // stride_length + 1
    idx = (jnp.arange(nb) * stride_length)[:, None] + jnp.arange(L)[None, :]
    xu = x[:, :, idx, :]                           # (B, nh, nb, L, hs)
    xu = jnp.transpose(xu, (0, 1, 2, 4, 3))        # (B, nh, nb, hs, L)
    R = B * nh * nb * hs
    xw = xu.reshape(R, L)

    tile_rows = _choose_tile_rows(R, L, hs)
    grid = (pl.cdiv(R, tile_rows),)                # ragged last tile is masked

    # --- small operands, VMEM-resident across the whole grid -----------------
    pos = jnp.transpose(params["wpe"])             # (hs, L)
    pos_tiled = jnp.tile(pos, (tile_rows // hs, 1))  # (tile_rows, L)
    w1t = jnp.transpose(params["w1"])              # (L, H)
    w2 = params["w2"].reshape(1, H)
    wr = params["wr"].reshape(1, L)

    def const_spec(shape):
        return pl.BlockSpec(shape, lambda i: (0, 0))

    in_specs = [
        pl.BlockSpec((tile_rows, L), lambda i: (i, 0)),   # xw (row tiles)
        const_spec((tile_rows, L)),                       # pos
        const_spec((L, H)),                               # fc1 weight (T)
        const_spec((1, H)),                               # fc2 weight
        const_spec((1, L)),                               # residual weight
    ]
    args = [xw, pos_tiled, w1t, w2, wr]
    if has_bias:
        in_specs += [const_spec((1, H)), const_spec((1, 1))]
        args += [params["b1"].reshape(1, H),
                 (params["b2"] + params["br"]).reshape(1, 1)]

    out = pl.pallas_call(
        functools.partial(_cmlp_kernel, has_bias),
        out_shape=jax.ShapeDtypeStruct((R, 1), x.dtype),
        grid_spec=pltpu.PrefetchScalarGridSpec(
            num_scalar_prefetch=0,
            grid=grid,
            in_specs=in_specs,
            out_specs=pl.BlockSpec((tile_rows, 1), lambda i: (i, 0)),
        ),
        compiler_params=pltpu.CompilerParams(
            dimension_semantics=("parallel",),
            vmem_limit_bytes=32 * 1024 * 1024,
        ),
    )(*args)

    return out.reshape(B, nh, nb, hs)


# ---------------------------------------------------------------------------
# Pure-JAX reference (mirrors the PyTorch module, eval mode)
# ---------------------------------------------------------------------------

def compression_mlp_ref(x, params, *, block_length, stride_length):
    B, nh, T, hs = x.shape
    L = block_length
    if T < L:
        return x
    nb = (T - L) // stride_length + 1
    idx = (jnp.arange(nb) * stride_length)[:, None] + jnp.arange(L)[None, :]
    xu = jnp.transpose(x[:, :, idx, :], (0, 1, 2, 4, 3))      # (B,nh,nb,hs,L)
    pos = jnp.transpose(params["wpe"])                        # (hs, L)
    xp = xu + pos
    h = jnp.einsum("...l,hl->...h", xp, params["w1"],
                   precision=jax.lax.Precision.HIGHEST)
    if params["b1"] is not None:
        h = h + params["b1"]
    h = jax.nn.gelu(h, approximate=False)
    main = jnp.sum(h * params["w2"][0], axis=-1)
    res = jnp.sum(xu * params["wr"][0], axis=-1)
    if params["b2"] is not None:
        main = main + params["b2"][0]
        res = res + params["br"][0]
    return jnp.clip(main + res, -3.0, 3.0).astype(x.dtype)


if __name__ == "__main__":
    key = jax.random.PRNGKey(0)
    ks = jax.random.split(key, 8)

    # Small config consistent with the module: n_embd=32, n_head=2 -> hs=16,
    # block_length=8, stride_length=4, batch=2, T=16 -> num_blocks=3.
    B, nh, T = 2, 2, 16
    n_embd, n_head = 32, 2
    hs = n_embd // n_head
    L, stride = 8, 4
    H = 4 * L

    x = jax.random.normal(ks[0], (B, nh, T, hs), dtype=jnp.float32)

    def init_linear(k, out_f, in_f):
        bound = 1.0 / (in_f ** 0.5)
        return jax.random.uniform(k, (out_f, in_f), jnp.float32, -bound, bound)

    params = {
        "w1": init_linear(ks[1], H, L),                               # fc1.weight
        "b1": 0.1 * jax.random.normal(ks[2], (H,), jnp.float32),      # fc1.bias
        "w2": init_linear(ks[3], 1, H),                               # fc2.weight
        "b2": 0.1 * jax.random.normal(ks[4], (1,), jnp.float32),      # fc2.bias
        "wr": init_linear(ks[5], 1, L),                               # residual_proj.weight
        "br": 0.1 * jax.random.normal(ks[6], (1,), jnp.float32),      # residual_proj.bias
        "wpe": 0.3 * jax.random.normal(ks[7], (L, hs), jnp.float32),  # wpe_block.weight
    }

    out = compression_mlp_forward(x, params, block_length=L, stride_length=stride)
    out = jax.block_until_ready(out)
    ref = compression_mlp_ref(x, params, block_length=L, stride_length=stride)
    nb = (T - L) // stride + 1
    assert out.shape == (B, nh, nb, hs) and out.dtype == x.dtype
    assert jnp.allclose(out, ref, atol=1e-4, rtol=1e-4), "mismatch vs reference"

    # config.bias = False path (no Linear biases) — specialized kernel.
    params_nb = dict(params, b1=None, b2=None, br=None)
    out_nb = jax.block_until_ready(
        compression_mlp_forward(x, params_nb, block_length=L, stride_length=stride))
    ref_nb = compression_mlp_ref(x, params_nb, block_length=L, stride_length=stride)
    assert jnp.allclose(out_nb, ref_nb, atol=1e-4, rtol=1e-4), "mismatch (no bias)"

    # T < block_length early-return path returns the input unchanged.
    short = compression_mlp_forward(x[:, :, : L - 1], params,
                                    block_length=L, stride_length=stride)
    assert short.shape == (B, nh, L - 1, hs)

    print("KERNEL_OK")
</pallas_src>

<mosaic_0001>
module attributes {stable_mosaic.version = 11 : i64} {
  func.func @_cmlp_kernel(%arg0: i32, %arg1: memref<192x8xf32, #tpu.memory_space<vmem>>, %arg2: memref<192x8xf32, #tpu.memory_space<vmem>>, %arg3: memref<8x32xf32, #tpu.memory_space<vmem>>, %arg4: memref<1x32xf32, #tpu.memory_space<vmem>>, %arg5: memref<1x8xf32, #tpu.memory_space<vmem>>, %arg6: memref<1x32xf32, #tpu.memory_space<vmem>>, %arg7: memref<1x1xf32, #tpu.memory_space<vmem>>, %arg8: memref<192x1xf32, #tpu.memory_space<vmem>>) attributes {dimension_semantics = [#tpu.dimension_semantics<parallel>], iteration_bounds = array<i64: 1>, scalar_prefetch = 0 : i64, scratch_operands = 0 : i64, tpu.core_type = #tpu.core_type<tc>, window_params = [{transform_indices = @transform_0, window_bounds = array<i64: 192, 8>}, {pipeline_mode = #tpu.pipeline_mode<synchronous>, transform_indices = @transform_1, window_bounds = array<i64: 192, 8>}, {pipeline_mode = #tpu.pipeline_mode<synchronous>, transform_indices = @transform_2, window_bounds = array<i64: 8, 32>}, {pipeline_mode = #tpu.pipeline_mode<synchronous>, transform_indices = @transform_3, window_bounds = array<i64: 1, 32>}, {pipeline_mode = #tpu.pipeline_mode<synchronous>, transform_indices = @transform_4, window_bounds = array<i64: 1, 8>}, {pipeline_mode = #tpu.pipeline_mode<synchronous>, transform_indices = @transform_5, window_bounds = array<i64: 1, 32>}, {pipeline_mode = #tpu.pipeline_mode<synchronous>, transform_indices = @transform_6, window_bounds = array<i64: 1, 1>}, {transform_indices = @transform_7, window_bounds = array<i64: 192, 1>}]} {
    %c0 = arith.constant 0 : index
    %c0_0 = arith.constant 0 : index
    %0 = vector.load %arg1[%c0, %c0_0] : memref<192x8xf32, #tpu.memory_space<vmem>>, vector<192x8xf32>
    %c0_1 = arith.constant 0 : index
    %c0_2 = arith.constant 0 : index
    %1 = vector.load %arg2[%c0_1, %c0_2] : memref<192x8xf32, #tpu.memory_space<vmem>>, vector<192x8xf32>
    %2 = arith.addf %0, %1 : vector<192x8xf32>
    %c0_3 = arith.constant 0 : index
    %c0_4 = arith.constant 0 : index
    %3 = vector.load %arg3[%c0_3, %c0_4] : memref<8x32xf32, #tpu.memory_space<vmem>>, vector<8x32xf32>
    %cst = arith.constant dense<0.000000e+00> : vector<192x32xf32>
    %4 = tpu.matmul %2, %3, %cst {dimension_numbers = #tpu.dot_dimension_numbers<[1], [0], [0], [1], [0, 0, 1, 1], [], []>} : vector<192x8xf32>, vector<8x32xf32>, vector<192x32xf32> -> vector<192x32xf32>
    %c0_5 = arith.constant 0 : index
    %c0_6 = arith.constant 0 : index
    %5 = vector.load %arg6[%c0_5, %c0_6] : memref<1x32xf32, #tpu.memory_space<vmem>>, vector<1x32xf32>
    %6 = vector.broadcast %5 : vector<1x32xf32> to vector<192x32xf32>
    %7 = arith.addf %4, %6 : vector<192x32xf32>
    %cst_7 = arith.constant 5.000000e-01 : f32
    %8 = vector.broadcast %cst_7 : f32 to vector<192x32xf32>
    %9 = arith.mulf %8, %7 : vector<192x32xf32>
    %cst_8 = arith.constant 0.707106769 : f32
    %10 = vector.broadcast %cst_8 : f32 to vector<192x32xf32>
    %11 = arith.mulf %7, %10 : vector<192x32xf32>
    %12 = math.absf %11 : vector<192x32xf32>
    %cst_9 = arith.constant 0.327591091 : f32
    %13 = vector.broadcast %cst_9 : f32 to vector<192x32xf32>
    %14 = arith.mulf %13, %12 : vector<192x32xf32>
    %cst_10 = arith.constant 1.000000e+00 : f32
    %15 = vector.broadcast %cst_10 : f32 to vector<192x32xf32>
    %16 = arith.addf %15, %14 : vector<192x32xf32>
    %cst_11 = arith.constant 1.000000e+00 : f32
    %17 = vector.broadcast %cst_11 : f32 to vector<192x32xf32>
    %18 = arith.divf %17, %16 : vector<192x32xf32>
    %cst_12 = arith.constant 1.06140542 : f32
    %19 = vector.broadcast %cst_12 : f32 to vector<192x32xf32>
    %20 = arith.mulf %19, %18 : vector<192x32xf32>
    %cst_13 = arith.constant -1.45315206 : f32
    %21 = vector.broadcast %cst_13 : f32 to vector<192x32xf32>
    %22 = arith.addf %20, %21 : vector<192x32xf32>
    %23 = arith.mulf %22, %18 : vector<192x32xf32>
    %cst_14 = arith.constant 1.42141378 : f32
    %24 = vector.broadcast %cst_14 : f32 to vector<192x32xf32>
    %25 = arith.addf %23, %24 : vector<192x32xf32>
    %26 = arith.mulf %25, %18 : vector<192x32xf32>
    %cst_15 = arith.constant -0.284496725 : f32
    %27 = vector.broadcast %cst_15 : f32 to vector<192x32xf32>
    %28 = arith.addf %26, %27 : vector<192x32xf32>
    %29 = arith.mulf %28, %18 : vector<192x32xf32>
    %cst_16 = arith.constant 0.254829586 : f32
    %30 = vector.broadcast %cst_16 : f32 to vector<192x32xf32>
    %31 = arith.addf %29, %30 : vector<192x32xf32>
    %32 = arith.mulf %31, %18 : vector<192x32xf32>
    %cst_17 = arith.constant 0.000000e+00 : f32
    %33 = vector.broadcast %cst_17 : f32 to vector<192x32xf32>
    %34 = arith.subf %33, %12 : vector<192x32xf32>
    %35 = arith.mulf %34, %12 : vector<192x32xf32>
    %36 = math.exp %35 : vector<192x32xf32>
    %37 = arith.mulf %32, %36 : vector<192x32xf32>
    %cst_18 = arith.constant 1.000000e+00 : f32
    %38 = vector.broadcast %cst_18 : f32 to vector<192x32xf32>
    %39 = arith.subf %38, %37 : vector<192x32xf32>
    %cst_19 = arith.constant 0.000000e+00 : f32
    %40 = vector.broadcast %cst_19 : f32 to vector<192x32xf32>
    %41 = arith.cmpf oge, %11, %40 : vector<192x32xf32>
    %cst_20 = arith.constant 0.000000e+00 : f32
    %42 = vector.broadcast %cst_20 : f32 to vector<192x32xf32>
    %43 = arith.subf %42, %39 : vector<192x32xf32>
    %44 = arith.select %41, %39, %43 : vector<192x32xi1>, vector<192x32xf32>
    %cst_21 = arith.constant 1.000000e+00 : f32
    %45 = vector.broadcast %cst_21 : f32 to vector<192x32xf32>
    %46 = arith.addf %45, %44 : vector<192x32xf32>
    %47 = arith.mulf %9, %46 : vector<192x32xf32>
    %c0_22 = arith.constant 0 : index
    %c0_23 = arith.constant 0 : index
    %48 = vector.load %arg4[%c0_22, %c0_23] : memref<1x32xf32, #tpu.memory_space<vmem>>, vector<1x32xf32>
    %49 = vector.broadcast %48 : vector<1x32xf32> to vector<192x32xf32>
    %50 = arith.mulf %47, %49 : vector<192x32xf32>
    %cst_24 = arith.constant dense<0.000000e+00> : vector<192xf32>
    %51 = vector.multi_reduction <add>, %50, %cst_24 [1] : vector<192x32xf32> to vector<192xf32>
    %52 = vector.shape_cast %51 : vector<192xf32> to vector<192x1xf32>
    %c0_25 = arith.constant 0 : index
    %c0_26 = arith.constant 0 : index
    %53 = vector.load %arg5[%c0_25, %c0_26] : memref<1x8xf32, #tpu.memory_space<vmem>>, vector<1x8xf32>
    %54 = vector.broadcast %53 : vector<1x8xf32> to vector<192x8xf32>
    %55 = arith.mulf %0, %54 : vector<192x8xf32>
    %cst_27 = arith.constant dense<0.000000e+00> : vector<192xf32>
    %56 = vector.multi_reduction <add>, %55, %cst_27 [1] : vector<192x8xf32> to vector<192xf32>
    %57 = vector.shape_cast %56 : vector<192xf32> to vector<192x1xf32>
    %58 = arith.addf %52, %57 : vector<192x1xf32>
    %c0_28 = arith.constant 0 : index
    %c0_29 = arith.constant 0 : index
    %59 = vector.load %arg7[%c0_28, %c0_29] : memref<1x1xf32, #tpu.memory_space<vmem>>, vector<1x1xf32>
    %60 = vector.broadcast %59 : vector<1x1xf32> to vector<192x1xf32>
    %61 = arith.addf %58, %60 : vector<192x1xf32>
    %cst_30 = arith.constant -3.000000e+00 : f32
    %cst_31 = arith.constant 3.000000e+00 : f32
    %62 = vector.broadcast %cst_30 : f32 to vector<192x1xf32>
    %63 = arith.maximumf %62, %61 : vector<192x1xf32>
    %64 = vector.broadcast %cst_31 : f32 to vector<192x1xf32>
    %65 = arith.minimumf %64, %63 : vector<192x1xf32>
    %c0_32 = arith.constant 0 : index
    %c0_33 = arith.constant 0 : index
    %66 = vector.load %arg8[%c0_32, %c0_33] : memref<192x1xf32, #tpu.memory_space<vmem>>, vector<192x1xf32>
    tpu.vector_store %arg8[%c0_32, %c0_33], %65 {strides = array<i32>} : memref<192x1xf32, #tpu.memory_space<vmem>>, vector<192x1xf32>,
    return
  }
  func.func @transform_0(%arg0: i32) -> (i32, i32) {
    %c0_i32 = arith.constant 0 : i32
    %c0_i32_0 = arith.constant 0 : i32
    return %arg0, %c0_i32 : i32, i32
  }
  func.func @transform_1(%arg0: i32) -> (i32, i32) {
    %c0_i32 = arith.constant 0 : i32
    %c0_i32_0 = arith.constant 0 : i32
    %c0_i32_1 = arith.constant 0 : i32
    return %c0_i32, %c0_i32_0 : i32, i32
  }
  func.func @transform_2(%arg0: i32) -> (i32, i32) {
    %c0_i32 = arith.constant 0 : i32
    %c0_i32_0 = arith.constant 0 : i32
    %c0_i32_1 = arith.constant 0 : i32
    return %c0_i32, %c0_i32_0 : i32, i32
  }
  func.func @transform_3(%arg0: i32) -> (i32, i32) {
    %c0_i32 = arith.constant 0 : i32
    %c0_i32_0 = arith.constant 0 : i32
    %c0_i32_1 = arith.constant 0 : i32
    return %c0_i32, %c0_i32_0 : i32, i32
  }
  func.func @transform_4(%arg0: i32) -> (i32, i32) {
    %c0_i32 = arith.constant 0 : i32
    %c0_i32_0 = arith.constant 0 : i32
    %c0_i32_1 = arith.constant 0 : i32
    return %c0_i32, %c0_i32_0 : i32, i32
  }
  func.func @transform_5(%arg0: i32) -> (i32, i32) {
    %c0_i32 = arith.constant 0 : i32
    %c0_i32_0 = arith.constant 0 : i32
    %c0_i32_1 = arith.constant 0 : i32
    return %c0_i32, %c0_i32_0 : i32, i32
  }
  func.func @transform_6(%arg0: i32) -> (i32, i32) {
    %c0_i32 = arith.constant 0 : i32
    %c0_i32_0 = arith.constant 0 : i32
    %c0_i32_1 = arith.constant 0 : i32
    return %c0_i32, %c0_i32_0 : i32, i32
  }
  func.func @transform_7(%arg0: i32) -> (i32, i32) {
    %c0_i32 = arith.constant 0 : i32
    %c0_i32_0 = arith.constant 0 : i32
    return %arg0, %c0_i32 : i32, i32
  }
}

</mosaic_0001>

<llo_original>
// kernel: tpu_custom_call.1
$region0: #{tpu_custom_call.1}
  #allocation0 [shape = 'u32[]', space=smem, size = 0x4, offset = 0x4, fixed_abs, tag = 'smem constant byte address 0x4 - core index']
  #allocation1 [shape = 'u32[144,128]{1,0:T(1,128)}', space=vmem, size = 0x12000, scoped, tag = 'internal scratch']
  #allocation2 [shape = 'f32[1,1]{1,0:T(1,128)S(1)}', space=vmem, size = 0x200, scoped, tag = 'scoped memory for tpu_custom_call.1']
  %s0 = inlined_call_operand.vmem [shape: f32[192,8], index: 0, kind: input, shape index: {}]
  %s1 = inlined_call_operand.vmem [shape: f32[192,8], index: 1, kind: input, shape index: {}]
  %s2 = inlined_call_operand.vmem [shape: f32[8,32], index: 2, kind: input, shape index: {}]
  %s3 = inlined_call_operand.vmem [shape: f32[1,32], index: 3, kind: input, shape index: {}]
  %s4 = inlined_call_operand.vmem [shape: f32[1,8], index: 4, kind: input, shape index: {}]
  %s5 = inlined_call_operand.vmem [shape: f32[1,32], index: 5, kind: input, shape index: {}]
  %s6 = inlined_call_operand.<no memory space> [shape: f32[1,1], index: 6, kind: input, shape index: {}]
  %s7 = inlined_call_operand.vmem [shape: f32[192,1], index: 7, kind: output, shape index: {}]
  %s8 = sld [smem:[#allocation0]]
  $region38: #{tpu_custom_call.1} parent=0
    _
  %s10 = ssub.s32 1, %s8
  %s11 = scalar_select 0, %s10, %s8
  %v12 = vstv %s6
  %13 = vst [vmem:[#allocation2] sm:$0x1] %v12
  // Predicated region
  $region2: #{tpu_custom_call.1} parent=0 // pred_check
    _
  $region3: #{tpu_custom_call.1} parent=0 // pred_check_branch
    %15 = sbr.rel (0) target = $region5
  $region4: #{tpu_custom_call.1} parent=0 // pred_region
    _
  $region5: #{tpu_custom_call.1} parent=0 // pred_fallthru
    _
  // Predicated region
  $region6: #{tpu_custom_call.1} parent=0 // pred_check
    _
  $region7: #{tpu_custom_call.1} parent=0 // pred_check_branch
    %17 = sbr.rel (0) target = $region9
  $region8: #{tpu_custom_call.1} parent=0 // pred_region
    _
  $region9: #{tpu_custom_call.1} parent=0 // pred_fallthru
    _
  // Predicated region
  $region10: #{tpu_custom_call.1} parent=0 // pred_check
    _
  $region11: #{tpu_custom_call.1} parent=0 // pred_check_branch
    %19 = sbr.rel (0) target = $region13
  $region12: #{tpu_custom_call.1} parent=0 // pred_region
    _
  $region13: #{tpu_custom_call.1} parent=0 // pred_fallthru
    _
  // Predicated region
  $region14: #{tpu_custom_call.1} parent=0 // pred_check
    _
  $region15: #{tpu_custom_call.1} parent=0 // pred_check_branch
    %21 = sbr.rel (0) target = $region17
  $region16: #{tpu_custom_call.1} parent=0 // pred_region
    _
  $region17: #{tpu_custom_call.1} parent=0 // pred_fallthru
    _
  // Predicated region
  $region18: #{tpu_custom_call.1} parent=0 // pred_check
    _
  $region19: #{tpu_custom_call.1} parent=0 // pred_check_branch
    %23 = sbr.rel (0) target = $region21
  $region20: #{tpu_custom_call.1} parent=0 // pred_region
    _
  $region21: #{tpu_custom_call.1} parent=0 // pred_fallthru
    _
  // Predicated region
  $region22: #{tpu_custom_call.1} parent=0 // pred_check
    _
  $region23: #{tpu_custom_call.1} parent=0 // pred_check_branch
    %25 = sbr.rel (0) target = $region25
  $region24: #{tpu_custom_call.1} parent=0 // pred_region
    _
  $region25: #{tpu_custom_call.1} parent=0 // pred_fallthru
    _
  // Predicated region
  $region26: #{tpu_custom_call.1} parent=0 // pred_check
    _
  $region27: #{tpu_custom_call.1} parent=0 // pred_check_branch
    %27 = sbr.rel (0) target = $region29
  $region28: #{tpu_custom_call.1} parent=0 // pred_region
    _
  $region29: #{tpu_custom_call.1} parent=0 // pred_fallthru
    _
  %v28 = vld [vmem:[%s0] sm:$0xff]
  %v29 = vld [vmem:[%s0 + $0x8] sm:$0xff]
  %v30 = vld [vmem:[%s0 + $0x10] sm:$0xff]
  %v31 = vld [vmem:[%s0 + $0x18] sm:$0xff]
  %v32 = vld [vmem:[%s0 + $0x20] sm:$0xff]
  %v33 = vld [vmem:[%s0 + $0x28] sm:$0xff]
  %v34 = vld [vmem:[%s0 + $0x30] sm:$0xff]
  %v35 = vld [vmem:[%s0 + $0x38] sm:$0xff]
  %v36 = vld [vmem:[%s0 + $0x40] sm:$0xff]
  %v37 = vld [vmem:[%s0 + $0x48] sm:$0xff]
  %v38 = vld [vmem:[%s0 + $0x50] sm:$0xff]
  %v39 = vld [vmem:[%s0 + $0x58] sm:$0xff]
  %v40 = vld [vmem:[%s0 + $0x60] sm:$0xff]
  %v41 = vld [vmem:[%s0 + $0x68] sm:$0xff]
  %v42 = vld [vmem:[%s0 + $0x70] sm:$0xff]
  %v43 = vld [vmem:[%s0 + $0x78] sm:$0xff]
  %v44 = vld [vmem:[%s0 + $0x80] sm:$0xff]
  %v45 = vld [vmem:[%s0 + $0x88] sm:$0xff]
  %v46 = vld [vmem:[%s0 + $0x90] sm:$0xff]
  %v47 = vld [vmem:[%s0 + $0x98] sm:$0xff]
  %v48 = vld [vmem:[%s0 + $0xa0] sm:$0xff]
  %v49 = vld [vmem:[%s0 + $0xa8] sm:$0xff]
  %v50 = vld [vmem:[%s0 + $0xb0] sm:$0xff]
  %v51 = vld [vmem:[%s0 + $0xb8] sm:$0xff]
  %v52 = vld [vmem:[%s1] sm:$0xff]
  %v53 = vld [vmem:[%s1 + $0x8] sm:$0xff]
  %v54 = vld [vmem:[%s1 + $0x10] sm:$0xff]
  %v55 = vld [vmem:[%s1 + $0x18] sm:$0xff]
  %v56 = vld [vmem:[%s1 + $0x20] sm:$0xff]
  %v57 = vld [vmem:[%s1 + $0x28] sm:$0xff]
  %v58 = vld [vmem:[%s1 + $0x30] sm:$0xff]
  %v59 = vld [vmem:[%s1 + $0x38] sm:$0xff]
  %v60 = vld [vmem:[%s1 + $0x40] sm:$0xff]
  %v61 = vld [vmem:[%s1 + $0x48] sm:$0xff]
  %v62 = vld [vmem:[%s1 + $0x50] sm:$0xff]
  %v63 = vld [vmem:[%s1 + $0x58] sm:$0xff]
  %v64 = vld [vmem:[%s1 + $0x60] sm:$0xff]
  %v65 = vld [vmem:[%s1 + $0x68] sm:$0xff]
  %v66 = vld [vmem:[%s1 + $0x70] sm:$0xff]
  %v67 = vld [vmem:[%s1 + $0x78] sm:$0xff]
  %v68 = vld [vmem:[%s1 + $0x80] sm:$0xff]
  %v69 = vld [vmem:[%s1 + $0x88] sm:$0xff]
  %v70 = vld [vmem:[%s1 + $0x90] sm:$0xff]
  %v71 = vld [vmem:[%s1 + $0x98] sm:$0xff]
  %v72 = vld [vmem:[%s1 + $0xa0] sm:$0xff]
  %v73 = vld [vmem:[%s1 + $0xa8] sm:$0xff]
  %v74 = vld [vmem:[%s1 + $0xb0] sm:$0xff]
  %v75 = vld [vmem:[%s1 + $0xb8] sm:$0xff]
  %v76 = vadd.f32 %v28, %v52
  %v77 = vadd.f32 %v29, %v53
  %v78 = vadd.f32 %v30, %v54
  %v79 = vadd.f32 %v31, %v55
  %v80 = vadd.f32 %v32, %v56
  %v81 = vadd.f32 %v33, %v57
  %v82 = vadd.f32 %v34, %v58
  %v83 = vadd.f32 %v35, %v59
  %v84 = vadd.f32 %v36, %v60
  %v85 = vadd.f32 %v37, %v61
  %v86 = vadd.f32 %v38, %v62
  %v87 = vadd.f32 %v39, %v63
  %v88 = vadd.f32 %v40, %v64
  %v89 = vadd.f32 %v41, %v65
  %v90 = vadd.f32 %v42, %v66
  %v91 = vadd.f32 %v43, %v67
  %v92 = vadd.f32 %v44, %v68
  %v93 = vadd.f32 %v45, %v69
  %v94 = vadd.f32 %v46, %v70
  %v95 = vadd.f32 %v47, %v71
  %v96 = vadd.f32 %v48, %v72
  %v97 = vadd.f32 %v49, %v73
  %v98 = vadd.f32 %v50, %v74
  %v99 = vadd.f32 %v51, %v75
  %v100 = vld [vmem:[%s2] sm:$0xff]
  %v101 = vld [vmem:[%s5] sm:$0x1]
  %v103 = vlaneseq
  %v104 = vshrl.u32 %v103, 7
  %v105 = vsub.s32 0, %v104
  %v106 = vrot.slane %v101, %v105
  %vm108 = vcmask 64512
  %v110 = vsel %vm108, %v76, 0
  %v113 = vsel %vm108, %v77, 0
  %v116 = vsel %vm108, %v78, 0
  %v119 = vsel %vm108, %v79, 0
  %v122 = vsel %vm108, %v80, 0
  %v125 = vsel %vm108, %v81, 0
  %v128 = vsel %vm108, %v82, 0
  %v131 = vsel %vm108, %v83, 0
  %v134 = vsel %vm108, %v84, 0
  %v137 = vsel %vm108, %v85, 0
  %v140 = vsel %vm108, %v86, 0
  %v143 = vsel %vm108, %v87, 0
  %v146 = vsel %vm108, %v88, 0
  %v149 = vsel %vm108, %v89, 0
  %v152 = vsel %vm108, %v90, 0
  %v155 = vsel %vm108, %v91, 0
  %v158 = vsel %vm108, %v92, 0
  %v161 = vsel %vm108, %v93, 0
  %v164 = vsel %vm108, %v94, 0
  %v167 = vsel %vm108, %v95, 0
  %v170 = vsel %vm108, %v96, 0
  %v173 = vsel %vm108, %v97, 0
  %v176 = vsel %vm108, %v98, 0
  %v179 = vsel %vm108, %v99, 0
  %181 = vmatprep.subr.mxu0 0.0
  %182 = vmatpush1.msra.mxu0 0.0
  %183 = vmatprep.subr.mxu0 0.0
  %184 = vmatpush1.msra.mxu0 0.0
  %185 = vmatprep.subr.mxu0 0.0
  %186 = vmatpush1.msra.mxu0 0.0
  %187 = vmatprep.subr.mxu0 0.0
  %188 = vmatpush1.msra.mxu0 0.0
  %189 = vmatprep.subr.mxu0 0.0
  %190 = vmatpush1.msra.mxu0 0.0
  %191 = vmatprep.subr.mxu0 0.0
  %192 = vmatpush1.msra.mxu0 0.0
  %193 = vmatprep.subr.mxu0 0.0
  %194 = vmatpush1.msra.mxu0 0.0
  %195 = vmatprep.subr.mxu0 0.0
  %196 = vmatpush1.msra.mxu0 0.0
  %197 = vmatprep.subr.mxu0 0.0
  %198 = vmatpush1.msra.mxu0 0.0
  %199 = vmatprep.subr.mxu0 0.0
  %200 = vmatpush1.msra.mxu0 0.0
  %201 = vmatprep.subr.mxu0 0.0
  %202 = vmatpush1.msra.mxu0 0.0
  %203 = vmatprep.subr.mxu0 0.0
  %204 = vmatpush1.msra.mxu0 0.0
  %205 = vmatprep.subr.mxu0 0.0
  %206 = vmatpush1.msra.mxu0 0.0
  %207 = vmatprep.subr.mxu0 0.0
  %208 = vmatpush1.msra.mxu0 0.0
  %209 = vmatprep.subr.mxu0 0.0
  %210 = vmatpush1.msra.mxu0 0.0
  %211 = vmatprep.subr.mxu0 0.0
  %212 = vmatpush1.msra.mxu0 %v100
  %213 = vmatprep.subr.mxu0 0.0
  %214 = vmatpush2.msra.mxu0 0.0
  %215 = vmatprep.subr.mxu0 0.0
  %216 = vmatpush2.msra.mxu0 0.0
  %217 = vmatprep.subr.mxu0 0.0
  %218 = vmatpush2.msra.mxu0 0.0
  %219 = vmatprep.subr.mxu0 0.0
  %220 = vmatpush2.msra.mxu0 0.0
  %221 = vmatprep.subr.mxu0 0.0
  %222 = vmatpush2.msra.mxu0 0.0
  %223 = vmatprep.subr.mxu0 0.0
  %224 = vmatpush2.msra.mxu0 0.0
  %225 = vmatprep.subr.mxu0 0.0
  %226 = vmatpush2.msra.mxu0 0.0
  %227 = vmatprep.subr.mxu0 0.0
  %228 = vmatpush2.msra.mxu0 0.0
  %229 = vmatprep.subr.mxu0 0.0
  %230 = vmatpush2.msra.mxu0 0.0
  %231 = vmatprep.subr.mxu0 0.0
  %232 = vmatpush2.msra.mxu0 0.0
  %233 = vmatprep.subr.mxu0 0.0
  %234 = vmatpush2.msra.mxu0 0.0
  %235 = vmatprep.subr.mxu0 0.0
  %236 = vmatpush2.msra.mxu0 0.0
  %237 = vmatprep.subr.mxu0 0.0
  %238 = vmatpush2.msra.mxu0 0.0
  %239 = vmatprep.subr.mxu0 0.0
  %240 = vmatpush2.msra.mxu0 0.0
  %241 = vmatprep.subr.mxu0 0.0
  %242 = vmatpush2.msra.mxu0 0.0
  %243 = vmatprep.subr.mxu0 0.0
  %244 = vmatpush2.msra.mxu0 0.0
  %245 = vmatprep.mubr.f32.mxu0 0.0
  %246 = vmatmul.mubr.f32.gmra.mxu0 %v110
  %v247 = vpop.f32.mrf.mxu0
  %v248 = vadd.f32 %v106, %v247
  %v249 = vpop.f32.mrf.mxu0
  %250 = vmatprep.mubr.f32.mxu0 0.0
  %251 = vmatmul.mubr.f32.gmra.mxu0 %v113
  %v252 = vpop.f32.mrf.mxu0
  %v253 = vadd.f32 %v106, %v252
  %v254 = vpop.f32.mrf.mxu0
  %255 = vmatprep.mubr.f32.mxu0 0.0
  %256 = vmatmul.mubr.f32.gmra.mxu0 %v116
  %v257 = vpop.f32.mrf.mxu0
  %v258 = vadd.f32 %v106, %v257
  %v259 = vpop.f32.mrf.mxu0
  %260 = vmatprep.mubr.f32.mxu0 0.0
  %261 = vmatmul.mubr.f32.gmra.mxu0 %v119
  %v262 = vpop.f32.mrf.mxu0
  %v263 = vadd.f32 %v106, %v262
  %v264 = vpop.f32.mrf.mxu0
  %265 = vmatprep.mubr.f32.mxu0 0.0
  %266 = vmatmul.mubr.f32.gmra.mxu0 %v122
  %v267 = vpop.f32.mrf.mxu0
  %v268 = vadd.f32 %v106, %v267
  %v269 = vpop.f32.mrf.mxu0
  %270 = vmatprep.mubr.f32.mxu0 0.0
  %271 = vmatmul.mubr.f32.gmra.mxu0 %v125
  %v272 = vpop.f32.mrf.mxu0
  %v273 = vadd.f32 %v106, %v272
  %v274 = vpop.f32.mrf.mxu0
  %275 = vmatprep.mubr.f32.mxu0 0.0
  %276 = vmatmul.mubr.f32.gmra.mxu0 %v128
  %v277 = vpop.f32.mrf.mxu0
  %v278 = vadd.f32 %v106, %v277
  %v279 = vpop.f32.mrf.mxu0
  %280 = vmatprep.mubr.f32.mxu0 0.0
  %281 = vmatmul.mubr.f32.gmra.mxu0 %v131
  %v282 = vpop.f32.mrf.mxu0
  %v283 = vadd.f32 %v106, %v282
  %v284 = vpop.f32.mrf.mxu0
  %285 = vmatprep.mubr.f32.mxu0 0.0
  %286 = vmatmul.mubr.f32.gmra.mxu0 %v134
  %v287 = vpop.f32.mrf.mxu0
  %v288 = vadd.f32 %v106, %v287
  %v289 = vpop.f32.mrf.mxu0
  %290 = vmatprep.mubr.f32.mxu0 0.0
  %291 = vmatmul.mubr.f32.gmra.mxu0 %v137
  %v292 = vpop.f32.mrf.mxu0
  %v293 = vadd.f32 %v106, %v292
  %v294 = vpop.f32.mrf.mxu0
  %295 = vmatprep.mubr.f32.mxu0 0.0
  %296 = vmatmul.mubr.f32.gmra.mxu0 %v140
  %v297 = vpop.f32.mrf.mxu0
  %v298 = vadd.f32 %v106, %v297
  %v299 = vpop.f32.mrf.mxu0
  %300 = vmatprep.mubr.f32.mxu0 0.0
  %301 = vmatmul.mubr.f32.gmra.mxu0 %v143
  %v302 = vpop.f32.mrf.mxu0
  %v303 = vadd.f32 %v106, %v302
  %v304 = vpop.f32.mrf.mxu0
  %305 = vmatprep.mubr.f32.mxu0 0.0
  %306 = vmatmul.mubr.f32.gmra.mxu0 %v146
  %v307 = vpop.f32.mrf.mxu0
  %v308 = vadd.f32 %v106, %v307
  %v309 = vpop.f32.mrf.mxu0
  %310 = vmatprep.mubr.f32.mxu0 0.0
  %311 = vmatmul.mubr.f32.gmra.mxu0 %v149
  %v312 = vpop.f32.mrf.mxu0
  %v313 = vadd.f32 %v106, %v312
  %v314 = vpop.f32.mrf.mxu0
  %315 = vmatprep.mubr.f32.mxu0 0.0
  %316 = vmatmul.mubr.f32.gmra.mxu0 %v152
  %v317 = vpop.f32.mrf.mxu0
  %v318 = vadd.f32 %v106, %v317
  %v319 = vpop.f32.mrf.mxu0
  %320 = vmatprep.mubr.f32.mxu0 0.0
  %321 = vmatmul.mubr.f32.gmra.mxu0 %v155
  %v322 = vpop.f32.mrf.mxu0
  %v323 = vadd.f32 %v106, %v322
  %v324 = vpop.f32.mrf.mxu0
  %325 = vmatprep.mubr.f32.mxu0 0.0
  %326 = vmatmul.mubr.f32.gmra.mxu0 %v158
  %v327 = vpop.f32.mrf.mxu0
  %v328 = vadd.f32 %v106, %v327
  %v329 = vpop.f32.mrf.mxu0
  %330 = vmatprep.mubr.f32.mxu0 0.0
  %331 = vmatmul.mubr.f32.gmra.mxu0 %v161
  %v332 = vpop.f32.mrf.mxu0
  %v333 = vadd.f32 %v106, %v332
  %v334 = vpop.f32.mrf.mxu0
  %335 = vmatprep.mubr.f32.mxu0 0.0
  %336 = vmatmul.mubr.f32.gmra.mxu0 %v164
  %v337 = vpop.f32.mrf.mxu0
  %v338 = vadd.f32 %v106, %v337
  %v339 = vpop.f32.mrf.mxu0
  %340 = vmatprep.mubr.f32.mxu0 0.0
  %341 = vmatmul.mubr.f32.gmra.mxu0 %v167
  %v342 = vpop.f32.mrf.mxu0
  %v343 = vadd.f32 %v106, %v342
  %v344 = vpop.f32.mrf.mxu0
  %345 = vmatprep.mubr.f32.mxu0 0.0
  %346 = vmatmul.mubr.f32.gmra.mxu0 %v170
  %v347 = vpop.f32.mrf.mxu0
  %v348 = vadd.f32 %v106, %v347
  %v349 = vpop.f32.mrf.mxu0
  %350 = vmatprep.mubr.f32.mxu0 0.0
  %351 = vmatmul.mubr.f32.gmra.mxu0 %v173
  %v352 = vpop.f32.mrf.mxu0
  %v353 = vadd.f32 %v106, %v352
  %v354 = vpop.f32.mrf.mxu0
  %355 = vmatprep.mubr.f32.mxu0 0.0
  %356 = vmatmul.mubr.f32.gmra.mxu0 %v176
  %v357 = vpop.f32.mrf.mxu0
  %v358 = vadd.f32 %v106, %v357
  %v359 = vpop.f32.mrf.mxu0
  %360 = vmatprep.mubr.f32.mxu0 0.0
  %361 = vmatmul.mubr.f32.gmra.mxu0 %v179
  %v362 = vpop.f32.mrf.mxu0
  %v363 = vadd.f32 %v106, %v362
  %v364 = vpop.f32.mrf.mxu0
  %365 = vdwg.mxu0
  %v366 = vmul.f32 %v248, 0.5
  %v367 = vmul.f32 %v253, 0.5
  %v368 = vmul.f32 %v258, 0.5
  %v369 = vmul.f32 %v263, 0.5
  %v370 = vmul.f32 %v268, 0.5
  %v371 = vmul.f32 %v273, 0.5
  %v372 = vmul.f32 %v278, 0.5
  %v373 = vmul.f32 %v283, 0.5
  %v374 = vmul.f32 %v288, 0.5
  %v375 = vmul.f32 %v293, 0.5
  %v376 = vmul.f32 %v298, 0.5
  %v377 = vmul.f32 %v303, 0.5
  %v378 = vmul.f32 %v308, 0.5
  %v379 = vmul.f32 %v313, 0.5
  %v380 = vmul.f32 %v318, 0.5
  %v381 = vmul.f32 %v323, 0.5
  %v382 = vmul.f32 %v328, 0.5
  %v383 = vmul.f32 %v333, 0.5
  %v384 = vmul.f32 %v338, 0.5
  %v385 = vmul.f32 %v343, 0.5
  %v386 = vmul.f32 %v348, 0.5
  %v387 = vmul.f32 %v353, 0.5
  %v388 = vmul.f32 %v358, 0.5
  %v389 = vmul.f32 %v363, 0.5
  %v390 = vmul.f32 %v248, 0.70710677
  %v391 = vmul.f32 %v253, 0.70710677
  %v392 = vmul.f32 %v258, 0.70710677
  %v393 = vmul.f32 %v263, 0.70710677
  %v394 = vmul.f32 %v268, 0.70710677
  %v395 = vmul.f32 %v273, 0.70710677
  %v396 = vmul.f32 %v278, 0.70710677
  %v397 = vmul.f32 %v283, 0.70710677
  %v398 = vmul.f32 %v288, 0.70710677
  %v399 = vmul.f32 %v293, 0.70710677
  %v400 = vmul.f32 %v298, 0.70710677
  %v401 = vmul.f32 %v303, 0.70710677
  %v402 = vmul.f32 %v308, 0.70710677
  %v403 = vmul.f32 %v313, 0.70710677
  %v404 = vmul.f32 %v318, 0.70710677
  %v405 = vmul.f32 %v323, 0.70710677
  %v406 = vmul.f32 %v328, 0.70710677
  %v407 = vmul.f32 %v333, 0.70710677
  %v408 = vmul.f32 %v338, 0.70710677
  %v409 = vmul.f32 %v343, 0.70710677
  %v410 = vmul.f32 %v348, 0.70710677
  %v411 = vmul.f32 %v353, 0.70710677
  %v412 = vmul.f32 %v358, 0.70710677
  %v413 = vmul.f32 %v363, 0.70710677
  %v414 = vand.u32 2147483647, %v390
  %v415 = vand.u32 2147483647, %v391
  %v416 = vand.u32 2147483647, %v392
  %v417 = vand.u32 2147483647, %v393
  %v418 = vand.u32 2147483647, %v394
  %v419 = vand.u32 2147483647, %v395
  %v420 = vand.u32 2147483647, %v396
  %v421 = vand.u32 2147483647, %v397
  %v422 = vand.u32 2147483647, %v398
  %v423 = vand.u32 2147483647, %v399
  %v424 = vand.u32 2147483647, %v400
  %v425 = vand.u32 2147483647, %v401
  %v426 = vand.u32 2147483647, %v402
  %v427 = vand.u32 2147483647, %v403
  %v428 = vand.u32 2147483647, %v404
  %v429 = vand.u32 2147483647, %v405
  %v430 = vand.u32 2147483647, %v406
  %v431 = vand.u32 2147483647, %v407
  %v432 = vand.u32 2147483647, %v408
  %v433 = vand.u32 2147483647, %v409
  %v434 = vand.u32 2147483647, %v410
  %v435 = vand.u32 2147483647, %v411
  %v436 = vand.u32 2147483647, %v412
  %v437 = vand.u32 2147483647, %v413
  %v438 = vmul.f32 %v414, 0.3275911
  %v439 = vmul.f32 %v415, 0.3275911
  %v440 = vmul.f32 %v416, 0.3275911
  %v441 = vmul.f32 %v417, 0.3275911
  %v442 = vmul.f32 %v418, 0.3275911
  %v443 = vmul.f32 %v419, 0.3275911
  %v444 = vmul.f32 %v420, 0.3275911
  %v445 = vmul.f32 %v421, 0.3275911
  %v446 = vmul.f32 %v422, 0.3275911
  %v447 = vmul.f32 %v423, 0.3275911
  %v448 = vmul.f32 %v424, 0.3275911
  %v449 = vmul.f32 %v425, 0.3275911
  %v450 = vmul.f32 %v426, 0.3275911
  %v451 = vmul.f32 %v427, 0.3275911
  %v452 = vmul.f32 %v428, 0.3275911
  %v453 = vmul.f32 %v429, 0.3275911
  %v454 = vmul.f32 %v430, 0.3275911
  %v455 = vmul.f32 %v431, 0.3275911
  %v456 = vmul.f32 %v432, 0.3275911
  %v457 = vmul.f32 %v433, 0.3275911
  %v458 = vmul.f32 %v434, 0.3275911
  %v459 = vmul.f32 %v435, 0.3275911
  %v460 = vmul.f32 %v436, 0.3275911
  %v461 = vmul.f32 %v437, 0.3275911
  %v462 = vadd.f32 %v438, 1.0
  %v463 = vadd.f32 %v439, 1.0
  %v464 = vadd.f32 %v440, 1.0
  %v465 = vadd.f32 %v441, 1.0
  %v466 = vadd.f32 %v442, 1.0
  %v467 = vadd.f32 %v443, 1.0
  %v468 = vadd.f32 %v444, 1.0
  %v469 = vadd.f32 %v445, 1.0
  %v470 = vadd.f32 %v446, 1.0
  %v471 = vadd.f32 %v447, 1.0
  %v472 = vadd.f32 %v448, 1.0
  %v473 = vadd.f32 %v449, 1.0
  %v474 = vadd.f32 %v450, 1.0
  %v475 = vadd.f32 %v451, 1.0
  %v476 = vadd.f32 %v452, 1.0
  %v477 = vadd.f32 %v453, 1.0
  %v478 = vadd.f32 %v454, 1.0
  %v479 = vadd.f32 %v455, 1.0
  %v480 = vadd.f32 %v456, 1.0
  %v481 = vadd.f32 %v457, 1.0
  %v482 = vadd.f32 %v458, 1.0
  %v483 = vadd.f32 %v459, 1.0
  %v484 = vadd.f32 %v460, 1.0
  %v485 = vadd.f32 %v461, 1.0
  %v486 = vrcp.pop %v462
  %v487 = vmul.f32 1.0, %v486
  %v488 = vrcp.pop %v463
  %v489 = vmul.f32 1.0, %v488
  %v490 = vrcp.pop %v464
  %v491 = vmul.f32 1.0, %v490
  %v492 = vrcp.pop %v465
  %v493 = vmul.f32 1.0, %v492
  %v494 = vrcp.pop %v466
  %v495 = vmul.f32 1.0, %v494
  %v496 = vrcp.pop %v467
  %v497 = vmul.f32 1.0, %v496
  %v498 = vrcp.pop %v468
  %v499 = vmul.f32 1.0, %v498
  %v500 = vrcp.pop %v469
  %v501 = vmul.f32 1.0, %v500
  %v502 = vrcp.pop %v470
  %v503 = vmul.f32 1.0, %v502
  %v504 = vrcp.pop %v471
  %v505 = vmul.f32 1.0, %v504
  %v506 = vrcp.pop %v472
  %v507 = vmul.f32 1.0, %v506
  %v508 = vrcp.pop %v473
  %v509 = vmul.f32 1.0, %v508
  %v510 = vrcp.pop %v474
  %v511 = vmul.f32 1.0, %v510
  %v512 = vrcp.pop %v475
  %v513 = vmul.f32 1.0, %v512
  %v514 = vrcp.pop %v476
  %v515 = vmul.f32 1.0, %v514
  %v516 = vrcp.pop %v477
  %v517 = vmul.f32 1.0, %v516
  %v518 = vrcp.pop %v478
  %v519 = vmul.f32 1.0, %v518
  %v520 = vrcp.pop %v479
  %v521 = vmul.f32 1.0, %v520
  %v522 = vrcp.pop %v480
  %v523 = vmul.f32 1.0, %v522
  %v524 = vrcp.pop %v481
  %v525 = vmul.f32 1.0, %v524
  %v526 = vrcp.pop %v482
  %v527 = vmul.f32 1.0, %v526
  %v528 = vrcp.pop %v483
  %v529 = vmul.f32 1.0, %v528
  %v530 = vrcp.pop %v484
  %v531 = vmul.f32 1.0, %v530
  %v532 = vrcp.pop %v485
  %v533 = vmul.f32 1.0, %v532
  %v534 = vmul.f32 %v487, 1.0614054
  %v535 = vmul.f32 %v489, 1.0614054
  %v536 = vmul.f32 %v491, 1.0614054
  %v537 = vmul.f32 %v493, 1.0614054
  %v538 = vmul.f32 %v495, 1.0614054
  %v539 = vmul.f32 %v497, 1.0614054
  %v540 = vmul.f32 %v499, 1.0614054
  %v541 = vmul.f32 %v501, 1.0614054
  %v542 = vmul.f32 %v503, 1.0614054
  %v543 = vmul.f32 %v505, 1.0614054
  %v544 = vmul.f32 %v507, 1.0614054
  %v545 = vmul.f32 %v509, 1.0614054
  %v546 = vmul.f32 %v511, 1.0614054
  %v547 = vmul.f32 %v513, 1.0614054
  %v548 = vmul.f32 %v515, 1.0614054
  %v549 = vmul.f32 %v517, 1.0614054
  %v550 = vmul.f32 %v519, 1.0614054
  %v551 = vmul.f32 %v521, 1.0614054
  %v552 = vmul.f32 %v523, 1.0614054
  %v553 = vmul.f32 %v525, 1.0614054
  %v554 = vmul.f32 %v527, 1.0614054
  %v555 = vmul.f32 %v529, 1.0614054
  %v556 = vmul.f32 %v531, 1.0614054
  %v557 = vmul.f32 %v533, 1.0614054
  %v558 = vadd.f32 %v534, -1.4531521
  %v559 = vadd.f32 %v535, -1.4531521
  %v560 = vadd.f32 %v536, -1.4531521
  %v561 = vadd.f32 %v537, -1.4531521
  %v562 = vadd.f32 %v538, -1.4531521
  %v563 = vadd.f32 %v539, -1.4531521
  %v564 = vadd.f32 %v540, -1.4531521
  %v565 = vadd.f32 %v541, -1.4531521
  %v566 = vadd.f32 %v542, -1.4531521
  %v567 = vadd.f32 %v543, -1.4531521
  %v568 = vadd.f32 %v544, -1.4531521
  %v569 = vadd.f32 %v545, -1.4531521
  %v570 = vadd.f32 %v546, -1.4531521
  %v571 = vadd.f32 %v547, -1.4531521
  %v572 = vadd.f32 %v548, -1.4531521
  %v573 = vadd.f32 %v549, -1.4531521
  %v574 = vadd.f32 %v550, -1.4531521
  %v575 = vadd.f32 %v551, -1.4531521
  %v576 = vadd.f32 %v552, -1.4531521
  %v577 = vadd.f32 %v553, -1.4531521
  %v578 = vadd.f32 %v554, -1.4531521
  %v579 = vadd.f32 %v555, -1.4531521
  %v580 = vadd.f32 %v556, -1.4531521
  %v581 = vadd.f32 %v557, -1.4531521
  %v582 = vmul.f32 %v558, %v487
  %v583 = vmul.f32 %v559, %v489
  %v584 = vmul.f32 %v560, %v491
  %v585 = vmul.f32 %v561, %v493
  %v586 = vmul.f32 %v562, %v495
  %v587 = vmul.f32 %v563, %v497
  %v588 = vmul.f32 %v564, %v499
  %v589 = vmul.f32 %v565, %v501
  %v590 = vmul.f32 %v566, %v503
  %v591 = vmul.f32 %v567, %v505
  %v592 = vmul.f32 %v568, %v507
  %v593 = vmul.f32 %v569, %v509
  %v594 = vmul.f32 %v570, %v511
  %v595 = vmul.f32 %v571, %v513
  %v596 = vmul.f32 %v572, %v515
  %v597 = vmul.f32 %v573, %v517
  %v598 = vmul.f32 %v574, %v519
  %v599 = vmul.f32 %v575, %v521
  %v600 = vmul.f32 %v576, %v523
  %v601 = vmul.f32 %v577, %v525
  %v602 = vmul.f32 %v578, %v527
  %v603 = vmul.f32 %v579, %v529
  %v604 = vmul.f32 %v580, %v531
  %v605 = vmul.f32 %v581, %v533
  %v606 = vadd.f32 %v582, 1.4214138
  %v607 = vadd.f32 %v583, 1.4214138
  %v608 = vadd.f32 %v584, 1.4214138
  %v609 = vadd.f32 %v585, 1.4214138
  %v610 = vadd.f32 %v586, 1.4214138
  %v611 = vadd.f32 %v587, 1.4214138
  %v612 = vadd.f32 %v588, 1.4214138
  %v613 = vadd.f32 %v589, 1.4214138
  %v614 = vadd.f32 %v590, 1.4214138
  %v615 = vadd.f32 %v591, 1.4214138
  %v616 = vadd.f32 %v592, 1.4214138
  %v617 = vadd.f32 %v593, 1.4214138
  %v618 = vadd.f32 %v594, 1.4214138
  %v619 = vadd.f32 %v595, 1.4214138
  %v620 = vadd.f32 %v596, 1.4214138
  %v621 = vadd.f32 %v597, 1.4214138
  %v622 = vadd.f32 %v598, 1.4214138
  %v623 = vadd.f32 %v599, 1.4214138
  %v624 = vadd.f32 %v600, 1.4214138
  %v625 = vadd.f32 %v601, 1.4214138
  %v626 = vadd.f32 %v602, 1.4214138
  %v627 = vadd.f32 %v603, 1.4214138
  %v628 = vadd.f32 %v604, 1.4214138
  %v629 = vadd.f32 %v605, 1.4214138
  %v630 = vmul.f32 %v606, %v487
  %v631 = vmul.f32 %v607, %v489
  %v632 = vmul.f32 %v608, %v491
  %v633 = vmul.f32 %v609, %v493
  %v634 = vmul.f32 %v610, %v495
  %v635 = vmul.f32 %v611, %v497
  %v636 = vmul.f32 %v612, %v499
  %v637 = vmul.f32 %v613, %v501
  %v638 = vmul.f32 %v614, %v503
  %v639 = vmul.f32 %v615, %v505
  %v640 = vmul.f32 %v616, %v507
  %v641 = vmul.f32 %v617, %v509
  %v642 = vmul.f32 %v618, %v511
  %v643 = vmul.f32 %v619, %v513
  %v644 = vmul.f32 %v620, %v515
  %v645 = vmul.f32 %v621, %v517
  %v646 = vmul.f32 %v622, %v519
  %v647 = vmul.f32 %v623, %v521
  %v648 = vmul.f32 %v624, %v523
  %v649 = vmul.f32 %v625, %v525
  %v650 = vmul.f32 %v626, %v527
  %v651 = vmul.f32 %v627, %v529
  %v652 = vmul.f32 %v628, %v531
  %v653 = vmul.f32 %v629, %v533
  %v654 = vadd.f32 %v630, -0.28449672
  %v655 = vadd.f32 %v631, -0.28449672
  %v656 = vadd.f32 %v632, -0.28449672
  %v657 = vadd.f32 %v633, -0.28449672
  %v658 = vadd.f32 %v634, -0.28449672
  %v659 = vadd.f32 %v635, -0.28449672
  %v660 = vadd.f32 %v636, -0.28449672
  %v661 = vadd.f32 %v637, -0.28449672
  %v662 = vadd.f32 %v638, -0.28449672
  %v663 = vadd.f32 %v639, -0.28449672
  %v664 = vadd.f32 %v640, -0.28449672
  %v665 = vadd.f32 %v641, -0.28449672
  %v666 = vadd.f32 %v642, -0.28449672
  %v667 = vadd.f32 %v643, -0.28449672
  %v668 = vadd.f32 %v644, -0.28449672
  %v669 = vadd.f32 %v645, -0.28449672
  %v670 = vadd.f32 %v646, -0.28449672
  %v671 = vadd.f32 %v647, -0.28449672
  %v672 = vadd.f32 %v648, -0.28449672
  %v673 = vadd.f32 %v649, -0.28449672
  %v674 = vadd.f32 %v650, -0.28449672
  %v675 = vadd.f32 %v651, -0.28449672
  %v676 = vadd.f32 %v652, -0.28449672
  %v677 = vadd.f32 %v653, -0.28449672
  %v678 = vmul.f32 %v654, %v487
  %v679 = vmul.f32 %v655, %v489
  %v680 = vmul.f32 %v656, %v491
  %v681 = vmul.f32 %v657, %v493
  %v682 = vmul.f32 %v658, %v495
  %v683 = vmul.f32 %v659, %v497
  %v684 = vmul.f32 %v660, %v499
  %v685 = vmul.f32 %v661, %v501
  %v686 = vmul.f32 %v662, %v503
  %v687 = vmul.f32 %v663, %v505
  %v688 = vmul.f32 %v664, %v507
  %v689 = vmul.f32 %v665, %v509
  %v690 = vmul.f32 %v666, %v511
  %v691 = vmul.f32 %v667, %v513
  %v692 = vmul.f32 %v668, %v515
  %v693 = vmul.f32 %v669, %v517
  %v694 = vmul.f32 %v670, %v519
  %v695 = vmul.f32 %v671, %v521
  %v696 = vmul.f32 %v672, %v523
  %v697 = vmul.f32 %v673, %v525
  %v698 = vmul.f32 %v674, %v527
  %v699 = vmul.f32 %v675, %v529
  %v700 = vmul.f32 %v676, %v531
  %v701 = vmul.f32 %v677, %v533
  %v702 = vadd.f32 %v678, 0.2548296
  %v703 = vadd.f32 %v679, 0.2548296
  %v704 = vadd.f32 %v680, 0.2548296
  %v705 = vadd.f32 %v681, 0.2548296
  %v706 = vadd.f32 %v682, 0.2548296
  %v707 = vadd.f32 %v683, 0.2548296
  %v708 = vadd.f32 %v684, 0.2548296
  %v709 = vadd.f32 %v685, 0.2548296
  %v710 = vadd.f32 %v686, 0.2548296
  %v711 = vadd.f32 %v687, 0.2548296
  %v712 = vadd.f32 %v688, 0.2548296
  %v713 = vadd.f32 %v689, 0.2548296
  %v714 = vadd.f32 %v690, 0.2548296
  %v715 = vadd.f32 %v691, 0.2548296
  %v716 = vadd.f32 %v692, 0.2548296
  %v717 = vadd.f32 %v693, 0.2548296
  %v718 = vadd.f32 %v694, 0.2548296
  %v719 = vadd.f32 %v695, 0.2548296
  %v720 = vadd.f32 %v696, 0.2548296
  %v721 = vadd.f32 %v697, 0.2548296
  %v722 = vadd.f32 %v698, 0.2548296
  %v723 = vadd.f32 %v699, 0.2548296
  %v724 = vadd.f32 %v700, 0.2548296
  %v725 = vadd.f32 %v701, 0.2548296
  %v726 = vmul.f32 %v702, %v487
  %v727 = vmul.f32 %v703, %v489
  %v728 = vmul.f32 %v704, %v491
  %v729 = vmul.f32 %v705, %v493
  %v730 = vmul.f32 %v706, %v495
  %v731 = vmul.f32 %v707, %v497
  %v732 = vmul.f32 %v708, %v499
  %v733 = vmul.f32 %v709, %v501
  %v734 = vmul.f32 %v710, %v503
  %v735 = vmul.f32 %v711, %v505
  %v736 = vmul.f32 %v712, %v507
  %v737 = vmul.f32 %v713, %v509
  %v738 = vmul.f32 %v714, %v511
  %v739 = vmul.f32 %v715, %v513
  %v740 = vmul.f32 %v716, %v515
  %v741 = vmul.f32 %v717, %v517
  %v742 = vmul.f32 %v718, %v519
  %v743 = vmul.f32 %v719, %v521
  %v744 = vmul.f32 %v720, %v523
  %v745 = vmul.f32 %v721, %v525
  %v746 = vmul.f32 %v722, %v527
  %v747 = vmul.f32 %v723, %v529
  %v748 = vmul.f32 %v724, %v531
  %v749 = vmul.f32 %v725, %v533
  %v750 = vsub.f32 0.0, %v414
  %v751 = vsub.f32 0.0, %v415
  %v752 = vsub.f32 0.0, %v416
  %v753 = vsub.f32 0.0, %v417
  %v754 = vsub.f32 0.0, %v418
  %v755 = vsub.f32 0.0, %v419
  %v756 = vsub.f32 0.0, %v420
  %v757 = vsub.f32 0.0, %v421
  %v758 = vsub.f32 0.0, %v422
  %v759 = vsub.f32 0.0, %v423
  %v760 = vsub.f32 0.0, %v424
  %v761 = vsub.f32 0.0, %v425
  %v762 = vsub.f32 0.0, %v426
  %v763 = vsub.f32 0.0, %v427
  %v764 = vsub.f32 0.0, %v428
  %v765 = vsub.f32 0.0, %v429
  %v766 = vsub.f32 0.0, %v430
  %v767 = vsub.f32 0.0, %v431
  %v768 = vsub.f32 0.0, %v432
  %v769 = vsub.f32 0.0, %v433
  %v770 = vsub.f32 0.0, %v434
  %v771 = vsub.f32 0.0, %v435
  %v772 = vsub.f32 0.0, %v436
  %v773 = vsub.f32 0.0, %v437
  %v774 = vmul.f32 %v750, %v414
  %v775 = vmul.f32 %v751, %v415
  %v776 = vmul.f32 %v752, %v416
  %v777 = vmul.f32 %v753, %v417
  %v778 = vmul.f32 %v754, %v418
  %v779 = vmul.f32 %v755, %v419
  %v780 = vmul.f32 %v756, %v420
  %v781 = vmul.f32 %v757, %v421
  %v782 = vmul.f32 %v758, %v422
  %v783 = vmul.f32 %v759, %v423
  %v784 = vmul.f32 %v760, %v424
  %v785 = vmul.f32 %v761, %v425
  %v786 = vmul.f32 %v762, %v426
  %v787 = vmul.f32 %v763, %v427
  %v788 = vmul.f32 %v764, %v428
  %v789 = vmul.f32 %v765, %v429
  %v790 = vmul.f32 %v766, %v430
  %v791 = vmul.f32 %v767, %v431
  %v792 = vmul.f32 %v768, %v432
  %v793 = vmul.f32 %v769, %v433
  %v794 = vmul.f32 %v770, %v434
  %v795 = vmul.f32 %v771, %v435
  %v796 = vmul.f32 %v772, %v436
  %v797 = vmul.f32 %v773, %v437
  %v798 = vmul.f32 %v774, 1.442695
  %v799 = vpow.pop %v798
  %v800 = vmul.f32 %v775, 1.442695
  %v801 = vpow.pop %v800
  %v802 = vmul.f32 %v776, 1.442695
  %v803 = vpow.pop %v802
  %v804 = vmul.f32 %v777, 1.442695
  %v805 = vpow.pop %v804
  %v806 = vmul.f32 %v778, 1.442695
  %v807 = vpow.pop %v806
  %v808 = vmul.f32 %v779, 1.442695
  %v809 = vpow.pop %v808
  %v810 = vmul.f32 %v780, 1.442695
  %v811 = vpow.pop %v810
  %v812 = vmul.f32 %v781, 1.442695
  %v813 = vpow.pop %v812
  %v814 = vmul.f32 %v782, 1.442695
  %v815 = vpow.pop %v814
  %v816 = vmul.f32 %v783, 1.442695
  %v817 = vpow.pop %v816
  %v818 = vmul.f32 %v784, 1.442695
  %v819 = vpow.pop %v818
  %v820 = vmul.f32 %v785, 1.442695
  %v821 = vpow.pop %v820
  %v822 = vmul.f32 %v786, 1.442695
  %v823 = vpow.pop %v822
  %v824 = vmul.f32 %v787, 1.442695
  %v825 = vpow.pop %v824
  %v826 = vmul.f32 %v788, 1.442695
  %v827 = vpow.pop %v826
  %v828 = vmul.f32 %v789, 1.442695
  %v829 = vpow.pop %v828
  %v830 = vmul.f32 %v790, 1.442695
  %v831 = vpow.pop %v830
  %v832 = vmul.f32 %v791, 1.442695
  %v833 = vpow.pop %v832
  %v834 = vmul.f32 %v792, 1.442695
  %v835 = vpow.pop %v834
  %v836 = vmul.f32 %v793, 1.442695
  %v837 = vpow.pop %v836
  %v838 = vmul.f32 %v794, 1.442695
  %v839 = vpow.pop %v838
  %v840 = vmul.f32 %v795, 1.442695
  %v841 = vpow.pop %v840
  %v842 = vmul.f32 %v796, 1.442695
  %v843 = vpow.pop %v842
  %v844 = vmul.f32 %v797, 1.442695
  %v845 = vpow.pop %v844
  %v846 = vmul.f32 %v726, %v799
  %v847 = vmul.f32 %v727, %v801
  %v848 = vmul.f32 %v728, %v803
  %v849 = vmul.f32 %v729, %v805
  %v850 = vmul.f32 %v730, %v807
  %v851 = vmul.f32 %v731, %v809
  %v852 = vmul.f32 %v732, %v811
  %v853 = vmul.f32 %v733, %v813
  %v854 = vmul.f32 %v734, %v815
  %v855 = vmul.f32 %v735, %v817
  %v856 = vmul.f32 %v736, %v819
  %v857 = vmul.f32 %v737, %v821
  %v858 = vmul.f32 %v738, %v823
  %v859 = vmul.f32 %v739, %v825
  %v860 = vmul.f32 %v740, %v827
  %v861 = vmul.f32 %v741, %v829
  %v862 = vmul.f32 %v742, %v831
  %v863 = vmul.f32 %v743, %v833
  %v864 = vmul.f32 %v744, %v835
  %v865 = vmul.f32 %v745, %v837
  %v866 = vmul.f32 %v746, %v839
  %v867 = vmul.f32 %v747, %v841
  %v868 = vmul.f32 %v748, %v843
  %v869 = vmul.f32 %v749, %v845
  %v870 = vsub.f32 1.0, %v846
  %v871 = vsub.f32 1.0, %v847
  %v872 = vsub.f32 1.0, %v848
  %v873 = vsub.f32 1.0, %v849
  %v874 = vsub.f32 1.0, %v850
  %v875 = vsub.f32 1.0, %v851
  %v876 = vsub.f32 1.0, %v852
  %v877 = vsub.f32 1.0, %v853
  %v878 = vsub.f32 1.0, %v854
  %v879 = vsub.f32 1.0, %v855
  %v880 = vsub.f32 1.0, %v856
  %v881 = vsub.f32 1.0, %v857
  %v882 = vsub.f32 1.0, %v858
  %v883 = vsub.f32 1.0, %v859
  %v884 = vsub.f32 1.0, %v860
  %v885 = vsub.f32 1.0, %v861
  %v886 = vsub.f32 1.0, %v862
  %v887 = vsub.f32 1.0, %v863
  %v888 = vsub.f32 1.0, %v864
  %v889 = vsub.f32 1.0, %v865
  %v890 = vsub.f32 1.0, %v866
  %v891 = vsub.f32 1.0, %v867
  %v892 = vsub.f32 1.0, %v868
  %v893 = vsub.f32 1.0, %v869
  %vm894 = vcmp.ge.f32.partialorder %v390, 0.0
  %vm895 = vcmp.ge.f32.partialorder %v391, 0.0
  %vm896 = vcmp.ge.f32.partialorder %v392, 0.0
  %vm897 = vcmp.ge.f32.partialorder %v393, 0.0
  %vm898 = vcmp.ge.f32.partialorder %v394, 0.0
  %vm899 = vcmp.ge.f32.partialorder %v395, 0.0
  %vm900 = vcmp.ge.f32.partialorder %v396, 0.0
  %vm901 = vcmp.ge.f32.partialorder %v397, 0.0
  %vm902 = vcmp.ge.f32.partialorder %v398, 0.0
  %vm903 = vcmp.ge.f32.partialorder %v399, 0.0
  %vm904 = vcmp.ge.f32.partialorder %v400, 0.0
  %vm905 = vcmp.ge.f32.partialorder %v401, 0.0
  %vm906 = vcmp.ge.f32.partialorder %v402, 0.0
  %vm907 = vcmp.ge.f32.partialorder %v403, 0.0
  %vm908 = vcmp.ge.f32.partialorder %v404, 0.0
  %vm909 = vcmp.ge.f32.partialorder %v405, 0.0
  %vm910 = vcmp.ge.f32.partialorder %v406, 0.0
  %vm911 = vcmp.ge.f32.partialorder %v407, 0.0
  %vm912 = vcmp.ge.f32.partialorder %v408, 0.0
  %vm913 = vcmp.ge.f32.partialorder %v409, 0.0
  %vm914 = vcmp.ge.f32.partialorder %v410, 0.0
  %vm915 = vcmp.ge.f32.partialorder %v411, 0.0
  %vm916 = vcmp.ge.f32.partialorder %v412, 0.0
  %vm917 = vcmp.ge.f32.partialorder %v413, 0.0
  %v918 = vsub.f32 0.0, %v870
  %v919 = vsub.f32 0.0, %v871
  %v920 = vsub.f32 0.0, %v872
  %v921 = vsub.f32 0.0, %v873
  %v922 = vsub.f32 0.0, %v874
  %v923 = vsub.f32 0.0, %v875
  %v924 = vsub.f32 0.0, %v876
  %v925 = vsub.f32 0.0, %v877
  %v926 = vsub.f32 0.0, %v878
  %v927 = vsub.f32 0.0, %v879
  %v928 = vsub.f32 0.0, %v880
  %v929 = vsub.f32 0.0, %v881
  %v930 = vsub.f32 0.0, %v882
  %v931 = vsub.f32 0.0, %v883
  %v932 = vsub.f32 0.0, %v884
  %v933 = vsub.f32 0.0, %v885
  %v934 = vsub.f32 0.0, %v886
  %v935 = vsub.f32 0.0, %v887
  %v936 = vsub.f32 0.0, %v888
  %v937 = vsub.f32 0.0, %v889
  %v938 = vsub.f32 0.0, %v890
  %v939 = vsub.f32 0.0, %v891
  %v940 = vsub.f32 0.0, %v892
  %v941 = vsub.f32 0.0, %v893
  %v942 = vsel %vm894, %v870, %v918
  %v943 = vsel %vm895, %v871, %v919
  %v944 = vsel %vm896, %v872, %v920
  %v945 = vsel %vm897, %v873, %v921
  %v946 = vsel %vm898, %v874, %v922
  %v947 = vsel %vm899, %v875, %v923
  %v948 = vsel %vm900, %v876, %v924
  %v949 = vsel %vm901, %v877, %v925
  %v950 = vsel %vm902, %v878, %v926
  %v951 = vsel %vm903, %v879, %v927
  %v952 = vsel %vm904, %v880, %v928
  %v953 = vsel %vm905, %v881, %v929
  %v954 = vsel %vm906, %v882, %v930
  %v955 = vsel %vm907, %v883, %v931
  %v956 = vsel %vm908, %v884, %v932
  %v957 = vsel %vm909, %v885, %v933
  %v958 = vsel %vm910, %v886, %v934
  %v959 = vsel %vm911, %v887, %v935
  %v960 = vsel %vm912, %v888, %v936
  %v961 = vsel %vm913, %v889, %v937
  %v962 = vsel %vm914, %v890, %v938
  %v963 = vsel %vm915, %v891, %v939
  %v964 = vsel %vm916, %v892, %v940
  %v965 = vsel %vm917, %v893, %v941
  %v966 = vadd.f32 %v942, 1.0
  %v967 = vadd.f32 %v943, 1.0
  %v968 = vadd.f32 %v944, 1.0
  %v969 = vadd.f32 %v945, 1.0
  %v970 = vadd.f32 %v946, 1.0
  %v971 = vadd.f32 %v947, 1.0
  %v972 = vadd.f32 %v948, 1.0
  %v973 = vadd.f32 %v949, 1.0
  %v974 = vadd.f32 %v950, 1.0
  %v975 = vadd.f32 %v951, 1.0
  %v976 = vadd.f32 %v952, 1.0
  %v977 = vadd.f32 %v953, 1.0
  %v978 = vadd.f32 %v954, 1.0
  %v979 = vadd.f32 %v955, 1.0
  %v980 = vadd.f32 %v956, 1.0
  %v981 = vadd.f32 %v957, 1.0
  %v982 = vadd.f32 %v958, 1.0
  %v983 = vadd.f32 %v959, 1.0
  %v984 = vadd.f32 %v960, 1.0
  %v985 = vadd.f32 %v961, 1.0
  %v986 = vadd.f32 %v962, 1.0
  %v987 = vadd.f32 %v963, 1.0
  %v988 = vadd.f32 %v964, 1.0
  %v989 = vadd.f32 %v965, 1.0
  %v990 = vmul.f32 %v366, %v966
  %v991 = vmul.f32 %v367, %v967
  %v992 = vmul.f32 %v368, %v968
  %v993 = vmul.f32 %v369, %v969
  %v994 = vmul.f32 %v370, %v970
  %v995 = vmul.f32 %v371, %v971
  %v996 = vmul.f32 %v372, %v972
  %v997 = vmul.f32 %v373, %v973
  %v998 = vmul.f32 %v374, %v974
  %v999 = vmul.f32 %v375, %v975
  %v1000 = vmul.f32 %v376, %v976
  %v1001 = vmul.f32 %v377, %v977
  %v1002 = vmul.f32 %v378, %v978
  %v1003 = vmul.f32 %v379, %v979
  %v1004 = vmul.f32 %v380, %v980
  %v1005 = vmul.f32 %v381, %v981
  %v1006 = vmul.f32 %v382, %v982
  %v1007 = vmul.f32 %v383, %v983
  %v1008 = vmul.f32 %v384, %v984
  %v1009 = vmul.f32 %v385, %v985
  %v1010 = vmul.f32 %v386, %v986
  %v1011 = vmul.f32 %v387, %v987
  %v1012 = vmul.f32 %v388, %v988
  %v1013 = vmul.f32 %v389, %v989
  %v1014 = vld [vmem:[%s3] sm:$0x1]
  %v1016 = vlaneseq
  %v1017 = vshrl.u32 %v1016, 7
  %v1018 = vsub.s32 0, %v1017
  %v1019 = vrot.slane %v1014, %v1018
  %v1021 = vmul.f32 %v990, %v1019
  %v1022 = vmul.f32 %v991, %v1019
  %v1023 = vmul.f32 %v992, %v1019
  %v1024 = vmul.f32 %v993, %v1019
  %v1025 = vmul.f32 %v994, %v1019
  %v1026 = vmul.f32 %v995, %v1019
  %v1027 = vmul.f32 %v996, %v1019
  %v1028 = vmul.f32 %v997, %v1019
  %v1029 = vmul.f32 %v998, %v1019
  %v1030 = vmul.f32 %v999, %v1019
  %v1031 = vmul.f32 %v1000, %v1019
  %v1032 = vmul.f32 %v1001, %v1019
  %v1033 = vmul.f32 %v1002, %v1019
  %v1034 = vmul.f32 %v1003, %v1019
  %v1035 = vmul.f32 %v1004, %v1019
  %v1036 = vmul.f32 %v1005, %v1019
  %v1037 = vmul.f32 %v1006, %v1019
  %v1038 = vmul.f32 %v1007, %v1019
  %v1039 = vmul.f32 %v1008, %v1019
  %v1040 = vmul.f32 %v1009, %v1019
  %v1041 = vmul.f32 %v1010, %v1019
  %v1042 = vmul.f32 %v1011, %v1019
  %v1043 = vmul.f32 %v1012, %v1019
  %v1044 = vmul.f32 %v1013, %v1019
  %vm1045 = vcmask 261120
  %v1046 = vsel %vm1045, %v1021, 0.0
  %1047 = vadd.xlane.f32.xlu0 %v1046
  %v1048 = vpop.xlane.xlu0 %1047
  %v1049 = vsel %vm1045, %v1022, 0.0
  %1050 = vadd.xlane.f32.xlu0 %v1049
  %v1051 = vpop.xlane.xlu0 %1050
  %v1052 = vsel %vm1045, %v1023, 0.0
  %1053 = vadd.xlane.f32.xlu0 %v1052
  %v1054 = vpop.xlane.xlu0 %1053
  %v1055 = vsel %vm1045, %v1024, 0.0
  %1056 = vadd.xlane.f32.xlu0 %v1055
  %v1057 = vpop.xlane.xlu0 %1056
  %v1058 = vsel %vm1045, %v1025, 0.0
  %1059 = vadd.xlane.f32.xlu0 %v1058
  %v1060 = vpop.xlane.xlu0 %1059
  %v1061 = vsel %vm1045, %v1026, 0.0
  %1062 = vadd.xlane.f32.xlu0 %v1061
  %v1063 = vpop.xlane.xlu0 %1062
  %v1064 = vsel %vm1045, %v1027, 0.0
  %1065 = vadd.xlane.f32.xlu0 %v1064
  %v1066 = vpop.xlane.xlu0 %1065
  %v1067 = vsel %vm1045, %v1028, 0.0
  %1068 = vadd.xlane.f32.xlu0 %v1067
  %v1069 = vpop.xlane.xlu0 %1068
  %v1070 = vsel %vm1045, %v1029, 0.0
  %1071 = vadd.xlane.f32.xlu0 %v1070
  %v1072 = vpop.xlane.xlu0 %1071
  %v1073 = vsel %vm1045, %v1030, 0.0
  %1074 = vadd.xlane.f32.xlu0 %v1073
  %v1075 = vpop.xlane.xlu0 %1074
  %v1076 = vsel %vm1045, %v1031, 0.0
  %1077 = vadd.xlane.f32.xlu0 %v1076
  %v1078 = vpop.xlane.xlu0 %1077
  %v1079 = vsel %vm1045, %v1032, 0.0
  %1080 = vadd.xlane.f32.xlu0 %v1079
  %v1081 = vpop.xlane.xlu0 %1080
  %v1082 = vsel %vm1045, %v1033, 0.0
  %1083 = vadd.xlane.f32.xlu0 %v1082
  %v1084 = vpop.xlane.xlu0 %1083
  %v1085 = vsel %vm1045, %v1034, 0.0
  %1086 = vadd.xlane.f32.xlu0 %v1085
  %v1087 = vpop.xlane.xlu0 %1086
  %v1088 = vsel %vm1045, %v1035, 0.0
  %1089 = vadd.xlane.f32.xlu0 %v1088
  %v1090 = vpop.xlane.xlu0 %1089
  %v1091 = vsel %vm1045, %v1036, 0.0
  %1092 = vadd.xlane.f32.xlu0 %v1091
  %v1093 = vpop.xlane.xlu0 %1092
  %v1094 = vsel %vm1045, %v1037, 0.0
  %1095 = vadd.xlane.f32.xlu0 %v1094
  %v1096 = vpop.xlane.xlu0 %1095
  %v1097 = vsel %vm1045, %v1038, 0.0
  %1098 = vadd.xlane.f32.xlu0 %v1097
  %v1099 = vpop.xlane.xlu0 %1098
  %v1100 = vsel %vm1045, %v1039, 0.0
  %1101 = vadd.xlane.f32.xlu0 %v1100
  %v1102 = vpop.xlane.xlu0 %1101
  %v1103 = vsel %vm1045, %v1040, 0.0
  %1104 = vadd.xlane.f32.xlu0 %v1103
  %v1105 = vpop.xlane.xlu0 %1104
  %v1106 = vsel %vm1045, %v1041, 0.0
  %1107 = vadd.xlane.f32.xlu0 %v1106
  %v1108 = vpop.xlane.xlu0 %1107
  %v1109 = vsel %vm1045, %v1042, 0.0
  %1110 = vadd.xlane.f32.xlu0 %v1109
  %v1111 = vpop.xlane.xlu0 %1110
  %v1112 = vsel %vm1045, %v1043, 0.0
  %1113 = vadd.xlane.f32.xlu0 %v1112
  %v1114 = vpop.xlane.xlu0 %1113
  %v1115 = vsel %vm1045, %v1044, 0.0
  %1116 = vadd.xlane.f32.xlu0 %v1115
  %v1117 = vpop.xlane.xlu0 %1116
  %v1118 = vld [vmem:[%s4] sm:$0x1]
  %v1120 = vlaneseq
  %v1121 = vshrl.u32 %v1120, 7
  %v1122 = vsub.s32 0, %v1121
  %v1123 = vrot.slane %v1118, %v1122
  %v1125 = vmul.f32 %v28, %v1123
  %v1126 = vmul.f32 %v29, %v1123
  %v1127 = vmul.f32 %v30, %v1123
  %v1128 = vmul.f32 %v31, %v1123
  %v1129 = vmul.f32 %v32, %v1123
  %v1130 = vmul.f32 %v33, %v1123
  %v1131 = vmul.f32 %v34, %v1123
  %v1132 = vmul.f32 %v35, %v1123
  %v1133 = vmul.f32 %v36, %v1123
  %v1134 = vmul.f32 %v37, %v1123
  %v1135 = vmul.f32 %v38, %v1123
  %v1136 = vmul.f32 %v39, %v1123
  %v1137 = vmul.f32 %v40, %v1123
  %v1138 = vmul.f32 %v41, %v1123
  %v1139 = vmul.f32 %v42, %v1123
  %v1140 = vmul.f32 %v43, %v1123
  %v1141 = vmul.f32 %v44, %v1123
  %v1142 = vmul.f32 %v45, %v1123
  %v1143 = vmul.f32 %v46, %v1123
  %v1144 = vmul.f32 %v47, %v1123
  %v1145 = vmul.f32 %v48, %v1123
  %v1146 = vmul.f32 %v49, %v1123
  %v1147 = vmul.f32 %v50, %v1123
  %v1148 = vmul.f32 %v51, %v1123
  %v1149 = vsel %vm108, %v1125, 0.0
  %1150 = vadd.xlane.f32.xlu0 %v1149
  %v1151 = vpop.xlane.xlu0 %1150
  %v1152 = vsel %vm108, %v1126, 0.0
  %1153 = vadd.xlane.f32.xlu0 %v1152
  %v1154 = vpop.xlane.xlu0 %1153
  %v1155 = vsel %vm108, %v1127, 0.0
  %1156 = vadd.xlane.f32.xlu0 %v1155
  %v1157 = vpop.xlane.xlu0 %1156
  %v1158 = vsel %vm108, %v1128, 0.0
  %1159 = vadd.xlane.f32.xlu0 %v1158
  %v1160 = vpop.xlane.xlu0 %1159
  %v1161 = vsel %vm108, %v1129, 0.0
  %1162 = vadd.xlane.f32.xlu0 %v1161
  %v1163 = vpop.xlane.xlu0 %1162
  %v1164 = vsel %vm108, %v1130, 0.0
  %1165 = vadd.xlane.f32.xlu0 %v1164
  %v1166 = vpop.xlane.xlu0 %1165
  %v1167 = vsel %vm108, %v1131, 0.0
  %1168 = vadd.xlane.f32.xlu0 %v1167
  %v1169 = vpop.xlane.xlu0 %1168
  %v1170 = vsel %vm108, %v1132, 0.0
  %1171 = vadd.xlane.f32.xlu0 %v1170
  %v1172 = vpop.xlane.xlu0 %1171
  %v1173 = vsel %vm108, %v1133, 0.0
  %1174 = vadd.xlane.f32.xlu0 %v1173
  %v1175 = vpop.xlane.xlu0 %1174
  %v1176 = vsel %vm108, %v1134, 0.0
  %1177 = vadd.xlane.f32.xlu0 %v1176
  %v1178 = vpop.xlane.xlu0 %1177
  %v1179 = vsel %vm108, %v1135, 0.0
  %1180 = vadd.xlane.f32.xlu0 %v1179
  %v1181 = vpop.xlane.xlu0 %1180
  %v1182 = vsel %vm108, %v1136, 0.0
  %1183 = vadd.xlane.f32.xlu0 %v1182
  %v1184 = vpop.xlane.xlu0 %1183
  %v1185 = vsel %vm108, %v1137, 0.0
  %1186 = vadd.xlane.f32.xlu0 %v1185
  %v1187 = vpop.xlane.xlu0 %1186
  %v1188 = vsel %vm108, %v1138, 0.0
  %1189 = vadd.xlane.f32.xlu0 %v1188
  %v1190 = vpop.xlane.xlu0 %1189
  %v1191 = vsel %vm108, %v1139, 0.0
  %1192 = vadd.xlane.f32.xlu0 %v1191
  %v1193 = vpop.xlane.xlu0 %1192
  %v1194 = vsel %vm108, %v1140, 0.0
  %1195 = vadd.xlane.f32.xlu0 %v1194
  %v1196 = vpop.xlane.xlu0 %1195
  %v1197 = vsel %vm108, %v1141, 0.0
  %1198 = vadd.xlane.f32.xlu0 %v1197
  %v1199 = vpop.xlane.xlu0 %1198
  %v1200 = vsel %vm108, %v1142, 0.0
  %1201 = vadd.xlane.f32.xlu0 %v1200
  %v1202 = vpop.xlane.xlu0 %1201
  %v1203 = vsel %vm108, %v1143, 0.0
  %1204 = vadd.xlane.f32.xlu0 %v1203
  %v1205 = vpop.xlane.xlu0 %1204
  %v1206 = vsel %vm108, %v1144, 0.0
  %1207 = vadd.xlane.f32.xlu0 %v1206
  %v1208 = vpop.xlane.xlu0 %1207
  %v1209 = vsel %vm108, %v1145, 0.0
  %1210 = vadd.xlane.f32.xlu0 %v1209
  %v1211 = vpop.xlane.xlu0 %1210
  %v1212 = vsel %vm108, %v1146, 0.0
  %1213 = vadd.xlane.f32.xlu0 %v1212
  %v1214 = vpop.xlane.xlu0 %1213
  %v1215 = vsel %vm108, %v1147, 0.0
  %1216 = vadd.xlane.f32.xlu0 %v1215
  %v1217 = vpop.xlane.xlu0 %1216
  %v1218 = vsel %vm108, %v1148, 0.0
  %1219 = vadd.xlane.f32.xlu0 %v1218
  %v1220 = vpop.xlane.xlu0 %1219
  %v1221 = vadd.f32 %v1048, %v1151
  %v1222 = vadd.f32 %v1051, %v1154
  %v1223 = vadd.f32 %v1054, %v1157
  %v1224 = vadd.f32 %v1057, %v1160
  %v1225 = vadd.f32 %v1060, %v1163
  %v1226 = vadd.f32 %v1063, %v1166
  %v1227 = vadd.f32 %v1066, %v1169
  %v1228 = vadd.f32 %v1069, %v1172
  %v1229 = vadd.f32 %v1072, %v1175
  %v1230 = vadd.f32 %v1075, %v1178
  %v1231 = vadd.f32 %v1078, %v1181
  %v1232 = vadd.f32 %v1081, %v1184
  %v1233 = vadd.f32 %v1084, %v1187
  %v1234 = vadd.f32 %v1087, %v1190
  %v1235 = vadd.f32 %v1090, %v1193
  %v1236 = vadd.f32 %v1093, %v1196
  %v1237 = vadd.f32 %v1096, %v1199
  %v1238 = vadd.f32 %v1099, %v1202
  %v1239 = vadd.f32 %v1102, %v1205
  %v1240 = vadd.f32 %v1105, %v1208
  %v1241 = vadd.f32 %v1108, %v1211
  %v1242 = vadd.f32 %v1111, %v1214
  %v1243 = vadd.f32 %v1114, %v1217
  %v1244 = vadd.f32 %v1117, %v1220
  %v1245 = vld [vmem:[#allocation2] sm:$0x1]
  %v1247 = vlaneseq
  %v1248 = vshrl.u32 %v1247, 7
  %v1249 = vsub.s32 0, %v1248
  %v1250 = vrot.slane %v1245, %v1249
  %v1252 = vadd.f32 %v1221, %v1250
  %v1253 = vadd.f32 %v1222, %v1250
  %v1254 = vadd.f32 %v1223, %v1250
  %v1255 = vadd.f32 %v1224, %v1250
  %v1256 = vadd.f32 %v1225, %v1250
  %v1257 = vadd.f32 %v1226, %v1250
  %v1258 = vadd.f32 %v1227, %v1250
  %v1259 = vadd.f32 %v1228, %v1250
  %v1260 = vadd.f32 %v1229, %v1250
  %v1261 = vadd.f32 %v1230, %v1250
  %v1262 = vadd.f32 %v1231, %v1250
  %v1263 = vadd.f32 %v1232, %v1250
  %v1264 = vadd.f32 %v1233, %v1250
  %v1265 = vadd.f32 %v1234, %v1250
  %v1266 = vadd.f32 %v1235, %v1250
  %v1267 = vadd.f32 %v1236, %v1250
  %v1268 = vadd.f32 %v1237, %v1250
  %v1269 = vadd.f32 %v1238, %v1250
  %v1270 = vadd.f32 %v1239, %v1250
  %v1271 = vadd.f32 %v1240, %v1250
  %v1272 = vadd.f32 %v1241, %v1250
  %v1273 = vadd.f32 %v1242, %v1250
  %v1274 = vadd.f32 %v1243, %v1250
  %v1275 = vadd.f32 %v1244, %v1250
  %v1276 = vmax.f32 %v1252, -3.0
  %v1277 = vmax.f32 %v1253, -3.0
  %v1278 = vmax.f32 %v1254, -3.0
  %v1279 = vmax.f32 %v1255, -3.0
  %v1280 = vmax.f32 %v1256, -3.0
  %v1281 = vmax.f32 %v1257, -3.0
  %v1282 = vmax.f32 %v1258, -3.0
  %v1283 = vmax.f32 %v1259, -3.0
  %v1284 = vmax.f32 %v1260, -3.0
  %v1285 = vmax.f32 %v1261, -3.0
  %v1286 = vmax.f32 %v1262, -3.0
  %v1287 = vmax.f32 %v1263, -3.0
  %v1288 = vmax.f32 %v1264, -3.0
  %v1289 = vmax.f32 %v1265, -3.0
  %v1290 = vmax.f32 %v1266, -3.0
  %v1291 = vmax.f32 %v1267, -3.0
  %v1292 = vmax.f32 %v1268, -3.0
  %v1293 = vmax.f32 %v1269, -3.0
  %v1294 = vmax.f32 %v1270, -3.0
  %v1295 = vmax.f32 %v1271, -3.0
  %v1296 = vmax.f32 %v1272, -3.0
  %v1297 = vmax.f32 %v1273, -3.0
  %v1298 = vmax.f32 %v1274, -3.0
  %v1299 = vmax.f32 %v1275, -3.0
  %v1300 = vmin.f32 %v1276, 3.0
  %v1301 = vmin.f32 %v1277, 3.0
  %v1302 = vmin.f32 %v1278, 3.0
  %v1303 = vmin.f32 %v1279, 3.0
  %v1304 = vmin.f32 %v1280, 3.0
  %v1305 = vmin.f32 %v1281, 3.0
  %v1306 = vmin.f32 %v1282, 3.0
  %v1307 = vmin.f32 %v1283, 3.0
  %v1308 = vmin.f32 %v1284, 3.0
  %v1309 = vmin.f32 %v1285, 3.0
  %v1310 = vmin.f32 %v1286, 3.0
  %v1311 = vmin.f32 %v1287, 3.0
  %v1312 = vmin.f32 %v1288, 3.0
  %v1313 = vmin.f32 %v1289, 3.0
  %v1314 = vmin.f32 %v1290, 3.0
  %v1315 = vmin.f32 %v1291, 3.0
  %v1316 = vmin.f32 %v1292, 3.0
  %v1317 = vmin.f32 %v1293, 3.0
  %v1318 = vmin.f32 %v1294, 3.0
  %v1319 = vmin.f32 %v1295, 3.0
  %v1320 = vmin.f32 %v1296, 3.0
  %v1321 = vmin.f32 %v1297, 3.0
  %v1322 = vmin.f32 %v1298, 3.0
  %v1323 = vmin.f32 %v1299, 3.0
  %vm1324 = vcmask 7168
  %1325 = vst.msk [vmem:[%s7] sm:$0xff] %vm1324, %v1300
  %1326 = vst.msk [vmem:[%s7 + $0x8] sm:$0xff] %vm1324, %v1301
  %1327 = vst.msk [vmem:[%s7 + $0x10] sm:$0xff] %vm1324, %v1302
  %1328 = vst.msk [vmem:[%s7 + $0x18] sm:$0xff] %vm1324, %v1303
  %1329 = vst.msk [vmem:[%s7 + $0x20] sm:$0xff] %vm1324, %v1304
  %1330 = vst.msk [vmem:[%s7 + $0x28] sm:$0xff] %vm1324, %v1305
  %1331 = vst.msk [vmem:[%s7 + $0x30] sm:$0xff] %vm1324, %v1306
  %1332 = vst.msk [vmem:[%s7 + $0x38] sm:$0xff] %vm1324, %v1307
  %1333 = vst.msk [vmem:[%s7 + $0x40] sm:$0xff] %vm1324, %v1308
  %1334 = vst.msk [vmem:[%s7 + $0x48] sm:$0xff] %vm1324, %v1309
  %1335 = vst.msk [vmem:[%s7 + $0x50] sm:$0xff] %vm1324, %v1310
  %1336 = vst.msk [vmem:[%s7 + $0x58] sm:$0xff] %vm1324, %v1311
  %1337 = vst.msk [vmem:[%s7 + $0x60] sm:$0xff] %vm1324, %v1312
  %1338 = vst.msk [vmem:[%s7 + $0x68] sm:$0xff] %vm1324, %v1313
  %1339 = vst.msk [vmem:[%s7 + $0x70] sm:$0xff] %vm1324, %v1314
  %1340 = vst.msk [vmem:[%s7 + $0x78] sm:$0xff] %vm1324, %v1315
  %1341 = vst.msk [vmem:[%s7 + $0x80] sm:$0xff] %vm1324, %v1316
  %1342 = vst.msk [vmem:[%s7 + $0x88] sm:$0xff] %vm1324, %v1317
  %1343 = vst.msk [vmem:[%s7 + $0x90] sm:$0xff] %vm1324, %v1318
  %1344 = vst.msk [vmem:[%s7 + $0x98] sm:$0xff] %vm1324, %v1319
  %1345 = vst.msk [vmem:[%s7 + $0xa0] sm:$0xff] %vm1324, %v1320
  %1346 = vst.msk [vmem:[%s7 + $0xa8] sm:$0xff] %vm1324, %v1321
  %1347 = vst.msk [vmem:[%s7 + $0xb0] sm:$0xff] %vm1324, %v1322
  %1348 = vst.msk [vmem:[%s7 + $0xb8] sm:$0xff] %vm1324, %v1323
  // Predicated region
  $region30: #{tpu_custom_call.1} parent=0 // pred_check
    _
  $region31: #{tpu_custom_call.1} parent=0 // pred_check_branch
    %1350 = sbr.rel (0) target = $region33
  $region32: #{tpu_custom_call.1} parent=0 // pred_region
    _
  $region33: #{tpu_custom_call.1} parent=0 // pred_fallthru
    _
  // Predicated region
  $region34: #{tpu_custom_call.1} parent=0 // pred_check
    _
  $region35: #{tpu_custom_call.1} parent=0 // pred_check_branch
    %1352 = sbr.rel (0) target = $region37
  $region36: #{tpu_custom_call.1} parent=0 // pred_region
    _
  $region37: #{tpu_custom_call.1} parent=0 // pred_fallthru
    _

</llo_original>
